<compile_context>
chip_gen: v7x
topology: tpu7x:2x2x1
jax: 0.10.0
libtpu: 0.0.40
codegen_flags: <defaults>
</compile_context>

<pallas_src>
import jax
import jax.numpy as jnp
from jax.experimental import pallas as pl
from jax.experimental.pallas import tpu as pltpu


def _gcn_kernel(ann_ref, adj_ref, w_ref, o_ref):
    # ann_ref: (TB, N, Da)     annotations with a trailing ones column (Da = D+1)
    # adj_ref: (TB, E, N, N)   adjacency, all edge types
    # w_ref:   (E+1, Da, U)    stacked [[W_e^T; b_e], ..., [W_2^T; b_2]]
    # o_ref:   (TB*N, U)       lane-dense 2-D output block
    TB, N, Da = ann_ref.shape
    E = adj_ref.shape[1]

    ann = ann_ref[...]                                    # (TB, N, Da)
    adj = adj_ref[...]                                    # (TB, E, N, N)
    # Relayout-free when N % 8 == 0 (sublane multiple); general N would add copies.
    ann2d = ann.reshape(TB * N, Da)

    # linear_2 term: [ann | 1] @ [W_2^T; b_2]  (the ones column supplies b_2).
    acc = jnp.dot(ann2d, w_ref[E], preferred_element_type=jnp.float32)

    # Adjacency-first reorder, one small batched matmul per edge type.
    # P_e = adj_e @ [ann | 1] is only (D+1) wide (vs U wide in the linear-first
    # order), and its last column is rowsum(adj_e) which carries b_e exactly.
    for e in range(E):                                    # E is small & static -> unrolled
        p_e = jnp.einsum("bnm,bmd->bnd", adj[:, e], ann,
                         preferred_element_type=jnp.float32)        # (TB, N, Da)
        acc = acc + jnp.dot(p_e.reshape(TB * N, Da), w_ref[e],
                            preferred_element_type=jnp.float32)     # (TB*N, U)

    # activation = Tanh; dropout_rate = 0.0 -> identity.
    # TODO(synk): nonzero dropout would need pltpu.prng_seed/prng_random_bits masking.
    o_ref[...] = jnp.tanh(acc).astype(o_ref.dtype)


def fuse_gcn_params(adj_w, adj_b, w2, b2):
    """One-time parameter fusion. Call at parameter-load time, NOT per forward pass.

    adj_w: (E, U, D) PyTorch-layout Linear weights, adj_b: (E, U)
    w2:    (U, D),   b2: (U,)
    returns (E+1, D+1, U): block e = [W_e^T; b_e], block E = [W_2^T; b_2].
    """
    w_all = jnp.concatenate([adj_w, w2[None]], axis=0)        # (E+1, U, D)
    b_all = jnp.concatenate([adj_b, b2[None]], axis=0)        # (E+1, U)
    return jnp.concatenate(
        [jnp.transpose(w_all, (0, 2, 1)), b_all[:, None, :]], axis=1)


def _pick_batch_tile(B, N, E, Da, U, itemsize,
                     rows_target=512, vmem_budget=8 << 20):
    """Batch elements per grid step: ~512 matmul rows, VMEM-bounded, divisor of B."""
    # ~512 rows fills a 256-wide MXU with headroom (and is a multiple of 128 for v5e).
    tb = max(1, min(B, rows_target // max(N, 1)))
    # Keep >= 2 grid steps whenever the batch allows it so the "parallel" grid axis
    # can be sharded across v7x's two TensorCores (cost on 1-TC v5e/v6e: one extra
    # ~0.35us grid step).
    if B >= 2:
        tb = max(1, min(tb, B // 2))
    # Stay well inside every generation's scoped-VMEM default with double buffering.
    per_b = (N * Da + E * N * N) * itemsize + N * U * 4
    w_bytes = (E + 1) * Da * U * 4
    while tb > 1 and 2 * tb * per_b + 2 * w_bytes > vmem_budget:
        tb //= 2
    # Divisor of B: no jnp.pad (which would cost an extra HBM pass over adj) and
    # no ragged tail handling.
    while B % tb:
        tb -= 1
    return tb


def graph_convolution_layer(n_tensor, adj_tensor, w_fused, h_tensor=None):
    """Pallas implementation of GraphConvolutionLayer.forward (activation=Tanh).

    n_tensor:   (B, N, Fn)
    adj_tensor: (B, E, N, N)
    w_fused:    (E+1, D+1, U) from fuse_gcn_params, D = Fn [+ Fh]
    h_tensor:   optional (B, N, Fh)
    returns:    (B, N, U)
    """
    if h_tensor is not None:
        # Rare path (demo uses None); concat once in HBM.
        annotations = jnp.concatenate((n_tensor, h_tensor), axis=-1)
    else:
        annotations = n_tensor

    B, N, D = annotations.shape
    E = adj_tensor.shape[1]
    Da = D + 1
    U = w_fused.shape[-1]
    assert w_fused.shape[:2] == (E + 1, Da), "w_fused does not match (E, D)"

    # Ones column: carries every bias term through the adjacency-first reorder.
    ann_aug = jnp.concatenate(
        [annotations, jnp.ones((B, N, 1), annotations.dtype)], axis=-1)

    TB = _pick_batch_tile(B, N, E, Da, U, ann_aug.dtype.itemsize)
    grid_b = B // TB

    flops = 2 * B * E * N * N * Da + 2 * B * N * (E + 1) * Da * U
    bytes_accessed = 4 * (ann_aug.size + adj_tensor.size + w_fused.size + B * N * U)

    out = pl.pallas_call(
        _gcn_kernel,
        out_shape=jax.ShapeDtypeStruct((B * N, U), annotations.dtype),
        grid_spec=pltpu.PrefetchScalarGridSpec(
            num_scalar_prefetch=0,
            grid=(grid_b,),
            in_specs=[
                pl.BlockSpec((TB, N, Da), lambda b: (b, 0, 0)),        # [ann | 1]
                pl.BlockSpec((TB, E, N, N), lambda b: (b, 0, 0, 0)),   # adjacency
                pl.BlockSpec((E + 1, Da, U), lambda b: (0, 0, 0)),     # fused weights
            ],
            out_specs=pl.BlockSpec((TB * N, U), lambda b: (b, 0)),
        ),
        compiler_params=pltpu.CompilerParams(
            dimension_semantics=("parallel",)),
        cost_estimate=pl.CostEstimate(
            flops=flops, transcendentals=B * N * U, bytes_accessed=bytes_accessed),
    )(ann_aug, adj_tensor, w_fused)

    # HBM-side rank change is free; kernel keeps a lane-dense (rows, 128) store.
    return out.reshape(B, N, U)


def _reference(n_tensor, adj_tensor, adj_w, adj_b, w2, b2, h_tensor=None):
    if h_tensor is not None:
        ann = jnp.concatenate((n_tensor, h_tensor), axis=-1)
    else:
        ann = n_tensor
    E = adj_tensor.shape[1]
    hp = jax.lax.Precision.HIGHEST
    outs = jnp.stack(
        [jnp.einsum("bnd,ud->bnu", ann, adj_w[e], precision=hp) + adj_b[e]
         for e in range(E)], axis=1)                          # (B, E, N, U)
    out = jnp.einsum("benm,bemu->benu", adj_tensor, outs, precision=hp)
    out_sum = jnp.sum(out, axis=1)                            # (B, N, U)
    out2 = jnp.einsum("bnd,ud->bnu", ann, w2, precision=hp) + b2
    return jnp.tanh(out_sum + out2)


if __name__ == "__main__":
    # Small, module-consistent shapes: batch=2, nodes=8, in_features=16,
    # edge_type_num=4, u=128 (lane-dense hidden width), h_tensor=None.
    B, N, Fn, E, U = 2, 8, 16, 4, 128

    key = jax.random.PRNGKey(0)
    ks = jax.random.split(key, 6)
    n_tensor = jax.random.normal(ks[0], (B, N, Fn), dtype=jnp.float32)
    adj_tensor = jax.random.uniform(ks[1], (B, E, N, N), dtype=jnp.float32)
    # Deterministic "Linear" params (PyTorch layout: (U, D) weight, (U,) bias).
    adj_w = 0.1 * jax.random.normal(ks[2], (E, U, Fn), dtype=jnp.float32)
    adj_b = 0.1 * jax.random.normal(ks[3], (E, U), dtype=jnp.float32)
    w2 = 0.1 * jax.random.normal(ks[4], (U, Fn), dtype=jnp.float32)
    b2 = 0.1 * jax.random.normal(ks[5], (U,), dtype=jnp.float32)

    # One-time weight/bias fusion (parameter-load time, not per forward call).
    w_fused = fuse_gcn_params(adj_w, adj_b, w2, b2)

    result = graph_convolution_layer(n_tensor, adj_tensor, w_fused)
    result = jax.block_until_ready(result)

    ref = _reference(n_tensor, adj_tensor, adj_w, adj_b, w2, b2)
    assert result.shape == (B, N, U)
    err = jnp.max(jnp.abs(result - ref))
    assert err < 1e-4, err

    print("KERNEL_OK")
</pallas_src>

<mosaic_0001>
module attributes {stable_mosaic.version = 11 : i64} {
  func.func @_gcn_kernel(%arg0: i32, %arg1: memref<1x8x17xf32, #tpu.memory_space<vmem>>, %arg2: memref<1x4x8x8xf32, #tpu.memory_space<vmem>>, %arg3: memref<5x17x128xf32, #tpu.memory_space<vmem>>, %arg4: memref<8x128xf32, #tpu.memory_space<vmem>>) attributes {dimension_semantics = [#tpu.dimension_semantics<parallel>], iteration_bounds = array<i64: 2>, scalar_prefetch = 0 : i64, scratch_operands = 0 : i64, tpu.core_type = #tpu.core_type<tc>, window_params = [{transform_indices = @transform_0, window_bounds = array<i64: 1, 8, 17>}, {transform_indices = @transform_1, window_bounds = array<i64: 1, 4, 8, 8>}, {pipeline_mode = #tpu.pipeline_mode<synchronous>, transform_indices = @transform_2, window_bounds = array<i64: 5, 17, 128>}, {transform_indices = @transform_3, window_bounds = array<i64: 8, 128>}]} {
    %c0 = arith.constant 0 : index
    %c0_0 = arith.constant 0 : index
    %c0_1 = arith.constant 0 : index
    %0 = vector.load %arg1[%c0, %c0_0, %c0_1] : memref<1x8x17xf32, #tpu.memory_space<vmem>>, vector<1x8x17xf32>
    %c0_2 = arith.constant 0 : index
    %c0_3 = arith.constant 0 : index
    %c0_4 = arith.constant 0 : index
    %c0_5 = arith.constant 0 : index
    %1 = vector.load %arg2[%c0_2, %c0_3, %c0_4, %c0_5] : memref<1x4x8x8xf32, #tpu.memory_space<vmem>>, vector<1x4x8x8xf32>
    %2 = vector.shape_cast %0 : vector<1x8x17xf32> to vector<8x17xf32>
    %c4 = arith.constant 4 : index
    %c0_6 = arith.constant 0 : index
    %c0_7 = arith.constant 0 : index
    %3 = vector.load %arg3[%c4, %c0_6, %c0_7] : memref<5x17x128xf32, #tpu.memory_space<vmem>>, vector<1x17x128xf32>
    %4 = vector.shape_cast %3 : vector<1x17x128xf32> to vector<17x128xf32>
    %cst = arith.constant dense<0.000000e+00> : vector<8x128xf32>
    %5 = tpu.matmul %2, %4, %cst {dimension_numbers = #tpu.dot_dimension_numbers<[1], [0], [0], [1], [0, 0, 1, 1], [], []>} : vector<8x17xf32>, vector<17x128xf32>, vector<8x128xf32> -> vector<8x128xf32>
    %6 = vector.extract_strided_slice %1 {offsets = [0, 0, 0, 0], sizes = [1, 1, 8, 8], strides = [1, 1, 1, 1]} : vector<1x4x8x8xf32> to vector<1x1x8x8xf32>
    %7 = vector.shape_cast %6 : vector<1x1x8x8xf32> to vector<1x8x8xf32>
    "tpu.trace_start"() <{level = 10 : i32, message = "bnm,bmd->bnd"}> : () -> ()
    %cst_8 = arith.constant dense<0.000000e+00> : vector<1x8x17xf32>
    %8 = tpu.matmul %7, %0, %cst_8 {dimension_numbers = #tpu.dot_dimension_numbers<[2], [1], [1], [2], [0, 0, 0, 1, 1, 2], [0], [0]>} : vector<1x8x8xf32>, vector<1x8x17xf32>, vector<1x8x17xf32> -> vector<1x8x17xf32>
    "tpu.trace_stop"() : () -> ()
    %9 = vector.shape_cast %8 : vector<1x8x17xf32> to vector<8x17xf32>
    %c0_9 = arith.constant 0 : index
    %c0_10 = arith.constant 0 : index
    %c0_11 = arith.constant 0 : index
    %10 = vector.load %arg3[%c0_9, %c0_10, %c0_11] : memref<5x17x128xf32, #tpu.memory_space<vmem>>, vector<1x17x128xf32>
    %11 = vector.shape_cast %10 : vector<1x17x128xf32> to vector<17x128xf32>
    %cst_12 = arith.constant dense<0.000000e+00> : vector<8x128xf32>
    %12 = tpu.matmul %9, %11, %cst_12 {dimension_numbers = #tpu.dot_dimension_numbers<[1], [0], [0], [1], [0, 0, 1, 1], [], []>} : vector<8x17xf32>, vector<17x128xf32>, vector<8x128xf32> -> vector<8x128xf32>
    %13 = arith.addf %5, %12 : vector<8x128xf32>
    %14 = vector.extract_strided_slice %1 {offsets = [0, 1, 0, 0], sizes = [1, 1, 8, 8], strides = [1, 1, 1, 1]} : vector<1x4x8x8xf32> to vector<1x1x8x8xf32>
    %15 = vector.shape_cast %14 : vector<1x1x8x8xf32> to vector<1x8x8xf32>
    "tpu.trace_start"() <{level = 10 : i32, message = "bnm,bmd->bnd"}> : () -> ()
    %cst_13 = arith.constant dense<0.000000e+00> : vector<1x8x17xf32>
    %16 = tpu.matmul %15, %0, %cst_13 {dimension_numbers = #tpu.dot_dimension_numbers<[2], [1], [1], [2], [0, 0, 0, 1, 1, 2], [0], [0]>} : vector<1x8x8xf32>, vector<1x8x17xf32>, vector<1x8x17xf32> -> vector<1x8x17xf32>
    "tpu.trace_stop"() : () -> ()
    %17 = vector.shape_cast %16 : vector<1x8x17xf32> to vector<8x17xf32>
    %c1 = arith.constant 1 : index
    %c0_14 = arith.constant 0 : index
    %c0_15 = arith.constant 0 : index
    %18 = vector.load %arg3[%c1, %c0_14, %c0_15] : memref<5x17x128xf32, #tpu.memory_space<vmem>>, vector<1x17x128xf32>
    %19 = vector.shape_cast %18 : vector<1x17x128xf32> to vector<17x128xf32>
    %cst_16 = arith.constant dense<0.000000e+00> : vector<8x128xf32>
    %20 = tpu.matmul %17, %19, %cst_16 {dimension_numbers = #tpu.dot_dimension_numbers<[1], [0], [0], [1], [0, 0, 1, 1], [], []>} : vector<8x17xf32>, vector<17x128xf32>, vector<8x128xf32> -> vector<8x128xf32>
    %21 = arith.addf %13, %20 : vector<8x128xf32>
    %22 = vector.extract_strided_slice %1 {offsets = [0, 2, 0, 0], sizes = [1, 1, 8, 8], strides = [1, 1, 1, 1]} : vector<1x4x8x8xf32> to vector<1x1x8x8xf32>
    %23 = vector.shape_cast %22 : vector<1x1x8x8xf32> to vector<1x8x8xf32>
    "tpu.trace_start"() <{level = 10 : i32, message = "bnm,bmd->bnd"}> : () -> ()
    %cst_17 = arith.constant dense<0.000000e+00> : vector<1x8x17xf32>
    %24 = tpu.matmul %23, %0, %cst_17 {dimension_numbers = #tpu.dot_dimension_numbers<[2], [1], [1], [2], [0, 0, 0, 1, 1, 2], [0], [0]>} : vector<1x8x8xf32>, vector<1x8x17xf32>, vector<1x8x17xf32> -> vector<1x8x17xf32>
    "tpu.trace_stop"() : () -> ()
    %25 = vector.shape_cast %24 : vector<1x8x17xf32> to vector<8x17xf32>
    %c2 = arith.constant 2 : index
    %c0_18 = arith.constant 0 : index
    %c0_19 = arith.constant 0 : index
    %26 = vector.load %arg3[%c2, %c0_18, %c0_19] : memref<5x17x128xf32, #tpu.memory_space<vmem>>, vector<1x17x128xf32>
    %27 = vector.shape_cast %26 : vector<1x17x128xf32> to vector<17x128xf32>
    %cst_20 = arith.constant dense<0.000000e+00> : vector<8x128xf32>
    %28 = tpu.matmul %25, %27, %cst_20 {dimension_numbers = #tpu.dot_dimension_numbers<[1], [0], [0], [1], [0, 0, 1, 1], [], []>} : vector<8x17xf32>, vector<17x128xf32>, vector<8x128xf32> -> vector<8x128xf32>
    %29 = arith.addf %21, %28 : vector<8x128xf32>
    %30 = vector.extract_strided_slice %1 {offsets = [0, 3, 0, 0], sizes = [1, 1, 8, 8], strides = [1, 1, 1, 1]} : vector<1x4x8x8xf32> to vector<1x1x8x8xf32>
    %31 = vector.shape_cast %30 : vector<1x1x8x8xf32> to vector<1x8x8xf32>
    "tpu.trace_start"() <{level = 10 : i32, message = "bnm,bmd->bnd"}> : () -> ()
    %cst_21 = arith.constant dense<0.000000e+00> : vector<1x8x17xf32>
    %32 = tpu.matmul %31, %0, %cst_21 {dimension_numbers = #tpu.dot_dimension_numbers<[2], [1], [1], [2], [0, 0, 0, 1, 1, 2], [0], [0]>} : vector<1x8x8xf32>, vector<1x8x17xf32>, vector<1x8x17xf32> -> vector<1x8x17xf32>
    "tpu.trace_stop"() : () -> ()
    %33 = vector.shape_cast %32 : vector<1x8x17xf32> to vector<8x17xf32>
    %c3 = arith.constant 3 : index
    %c0_22 = arith.constant 0 : index
    %c0_23 = arith.constant 0 : index
    %34 = vector.load %arg3[%c3, %c0_22, %c0_23] : memref<5x17x128xf32, #tpu.memory_space<vmem>>, vector<1x17x128xf32>
    %35 = vector.shape_cast %34 : vector<1x17x128xf32> to vector<17x128xf32>
    %cst_24 = arith.constant dense<0.000000e+00> : vector<8x128xf32>
    %36 = tpu.matmul %33, %35, %cst_24 {dimension_numbers = #tpu.dot_dimension_numbers<[1], [0], [0], [1], [0, 0, 1, 1], [], []>} : vector<8x17xf32>, vector<17x128xf32>, vector<8x128xf32> -> vector<8x128xf32>
    %37 = arith.addf %29, %36 : vector<8x128xf32>
    %38 = math.tanh %37 : vector<8x128xf32>
    %c0_25 = arith.constant 0 : index
    %c0_26 = arith.constant 0 : index
    %39 = vector.load %arg4[%c0_25, %c0_26] : memref<8x128xf32, #tpu.memory_space<vmem>>, vector<8x128xf32>
    tpu.vector_store %arg4[%c0_25, %c0_26], %38 {strides = array<i32>} : memref<8x128xf32, #tpu.memory_space<vmem>>, vector<8x128xf32>,
    return
  }
  func.func @transform_0(%arg0: i32) -> (i32, i32, i32) {
    %c0_i32 = arith.constant 0 : i32
    %c0_i32_0 = arith.constant 0 : i32
    %c0_i32_1 = arith.constant 0 : i32
    return %arg0, %c0_i32, %c0_i32_0 : i32, i32, i32
  }
  func.func @transform_1(%arg0: i32) -> (i32, i32, i32, i32) {
    %c0_i32 = arith.constant 0 : i32
    %c0_i32_0 = arith.constant 0 : i32
    %c0_i32_1 = arith.constant 0 : i32
    %c0_i32_2 = arith.constant 0 : i32
    return %arg0, %c0_i32, %c0_i32_0, %c0_i32_1 : i32, i32, i32, i32
  }
  func.func @transform_2(%arg0: i32) -> (i32, i32, i32) {
    %c0_i32 = arith.constant 0 : i32
    %c0_i32_0 = arith.constant 0 : i32
    %c0_i32_1 = arith.constant 0 : i32
    %c0_i32_2 = arith.constant 0 : i32
    return %c0_i32, %c0_i32_0, %c0_i32_1 : i32, i32, i32
  }
  func.func @transform_3(%arg0: i32) -> (i32, i32) {
    %c0_i32 = arith.constant 0 : i32
    %c0_i32_0 = arith.constant 0 : i32
    return %arg0, %c0_i32 : i32, i32
  }
}

</mosaic_0001>

<llo_original>
// kernel: tpu_custom_call.1
$region0: #{tpu_custom_call.1}
  #allocation0 [shape = 'u32[]', space=smem, size = 0x4, offset = 0x4, fixed_abs, tag = 'smem constant byte address 0x4 - core index']
  #allocation1 [shape = 'u32[144,128]{1,0:T(1,128)}', space=vmem, size = 0x12000, scoped, tag = 'internal scratch']
  %s0 = inlined_call_operand.hbm [shape: f32[2,8,17], index: 0, kind: input, shape index: {}]
  %s1 = inlined_call_operand.hbm [shape: f32[2,4,8,8], index: 1, kind: input, shape index: {}]
  %s2 = inlined_call_operand.hbm [shape: f32[5,17,128], index: 2, kind: input, shape index: {}]
  %s3 = inlined_call_operand.hbm [shape: f32[16,128], index: 3, kind: output, shape index: {}]
  %s4 = sld [smem:[#allocation0]]
  $region57: #{tpu_custom_call.1} parent=0
    _
  %s6 = ssub.s32 1, %s4
  %s7 = scalar_select 0, %s6, %s4
  $region1: #{tpu_custom_call.1} parent=0
    #allocation2 [shape = 'u8[8192]{0}', space=vmem, size = 0x2000, scoped, tag = 'input window, operand 0']
    #allocation3 [shape = 's32[2]{0}', space=sflag, size = 0x8, scoped, tag = 'scoped memory for tpu_custom_call.1']
    #allocation4 [shape = 's32[2]{0}', space=sflag, size = 0x8, scoped, tag = 'scoped memory for tpu_custom_call.1']
    #allocation5 [shape = 'u8[32768]{0}', space=vmem, size = 0x8000, scoped, tag = 'input window, operand 1']
    #allocation6 [shape = 's32[2]{0}', space=sflag, size = 0x8, scoped, tag = 'scoped memory for tpu_custom_call.1']
    #allocation7 [shape = 'u8[61440]{0}', space=vmem, size = 0xf000, scoped, tag = 'input window, operand 2, single buffered']
    #allocation8 [shape = 'u8[8192]{0}', space=vmem, size = 0x2000, scoped, tag = 'output window, operand 0']
    %8 = vsyncpa [#allocation3], 0
    %s9 = scalar_lea.sflag [#allocation3], 1
    %10 = vsyncpa %s9, 0
    %11 = vsyncpa [#allocation6], 0
    %s12 = scalar_lea.sflag [#allocation6], 1
    %13 = vsyncpa %s12, 0
    %14 = vsyncpa [#allocation4], 0
    %s15 = scalar_lea.sflag [#allocation4], 1
    %16 = vsyncpa %s15, 0
    loop: start=0, step=1, limit=4
    $region2: #{tpu_custom_call.1} parent=1 // loop_pre_header
      _
    $region3: #{tpu_custom_call.1} parent=1 // loop_header
      %s18 = sphi 0, %s22
      %p19 = scmp.ge.s32.totalorder %s18, 4
      %s28 = sphi 0, %s30
      %s31 = sphi 0, %s28
      %s32 = sphi 0, %s31
      %s48 = sphi 0, %s32
      %s54 = sphi 0, %s56
      %s57 = sphi 0, %s54
      %s58 = sphi 0, %s57
      %s74 = sphi 0, %s58
      %s78 = sphi 0, %s78
      %s80 = sphi 0, %s78
      %s81 = sphi 0, %s80
      %s95 = sphi 0, %s81
      %s101 = sphi 0, %s103
      %s104 = sphi 0, %s101
      %s105 = sphi 0, %s104
      %s121 = sphi 0, %s105
    $region4: #{tpu_custom_call.1} parent=1 // loop_header_branch
      %21 = sbr.rel (%p19) target = $region8
    $region5: #{tpu_custom_call.1} parent=1 // loop_body
      %s23 = ssub.s32 %s18, 1
      %s24 = ssub.s32 %s18, 2
      %s25 = sadd.s32 %s18, 1
      %s26 = ssub.s32 %s18, %s25
      %p27 = scmp.eq.s32.totalorder %s26, 0
      %s29 = sadd.s32 %s28, 1
      %s30 = scalar_select %p27, %s28, %s29
      %p33 = pneg %p27
      %p34 = scmp.eq.s32.totalorder %s18, 1
      %p35 = por %p33, %p34
      %p36 = scmp.ne.s32.totalorder %s28, %s31
      %p37 = scmp.eq.s32.totalorder %s18, 0
      %p38 = por %p36, %p37
      %p39 = scmp.ne.s32.totalorder %s28, %s31
      %p40 = scmp.eq.s32.totalorder %s23, 1
      %p41 = por %p39, %p40
      %p42 = scmp.ne.s32.totalorder %s31, %s32
      %p43 = scmp.eq.s32.totalorder %s23, 0
      %p44 = por %p42, %p43
      %p45 = scmp.ne.s32.totalorder %s31, %s32
      %p46 = scmp.eq.s32.totalorder %s24, 1
      %p47 = por %p45, %p46
      %p49 = scmp.ne.s32.totalorder %s32, %s48
      %p50 = scmp.eq.s32.totalorder %s24, 0
      %p51 = por %p49, %p50
      %s52 = ssub.s32 %s18, %s25
      %p53 = scmp.eq.s32.totalorder %s52, 0
      %s55 = sadd.s32 %s54, 1
      %s56 = scalar_select %p53, %s54, %s55
      %p59 = pneg %p53
      %p60 = scmp.eq.s32.totalorder %s18, 1
      %p61 = por %p59, %p60
      %p62 = scmp.ne.s32.totalorder %s54, %s57
      %p63 = scmp.eq.s32.totalorder %s18, 0
      %p64 = por %p62, %p63
      %p65 = scmp.ne.s32.totalorder %s54, %s57
      %p66 = scmp.eq.s32.totalorder %s23, 1
      %p67 = por %p65, %p66
      %p68 = scmp.ne.s32.totalorder %s57, %s58
      %p69 = scmp.eq.s32.totalorder %s23, 0
      %p70 = por %p68, %p69
      %p71 = scmp.ne.s32.totalorder %s57, %s58
      %p72 = scmp.eq.s32.totalorder %s24, 1
      %p73 = por %p71, %p72
      %p75 = scmp.ne.s32.totalorder %s58, %s74
      %p76 = scmp.eq.s32.totalorder %s24, 0
      %p77 = por %p75, %p76
      %s79 = sadd.s32 %s78, 1
      %p82 = scmp.eq.s32.totalorder %s18, 1
      %p83 = scmp.ne.s32.totalorder %s78, %s80
      %p84 = scmp.eq.s32.totalorder %s18, 0
      %p85 = por %p83, %p84
      %p86 = scmp.ne.s32.totalorder %s78, %s80
      %p87 = scmp.eq.s32.totalorder %s23, 1
      %p88 = por %p86, %p87
      %p89 = scmp.ne.s32.totalorder %s80, %s81
      %p90 = scmp.eq.s32.totalorder %s23, 0
      %p91 = por %p89, %p90
      %p92 = scmp.ne.s32.totalorder %s80, %s81
      %p93 = scmp.eq.s32.totalorder %s24, 1
      %p94 = por %p92, %p93
      %p96 = scmp.ne.s32.totalorder %s81, %s95
      %p97 = scmp.eq.s32.totalorder %s24, 0
      %p98 = por %p96, %p97
      %s99 = ssub.s32 %s18, %s25
      %p100 = scmp.eq.s32.totalorder %s99, 0
      %s102 = sadd.s32 %s101, 1
      %s103 = scalar_select %p100, %s101, %s102
      %p106 = pneg %p100
      %p107 = scmp.eq.s32.totalorder %s18, 1
      %p108 = por %p106, %p107
      %p109 = scmp.ne.s32.totalorder %s101, %s104
      %p110 = scmp.eq.s32.totalorder %s18, 0
      %p111 = por %p109, %p110
      %p112 = scmp.ne.s32.totalorder %s101, %s104
      %p113 = scmp.eq.s32.totalorder %s23, 1
      %p114 = por %p112, %p113
      %p115 = scmp.ne.s32.totalorder %s104, %s105
      %p116 = scmp.eq.s32.totalorder %s23, 0
      %p117 = por %p115, %p116
      %p118 = scmp.ne.s32.totalorder %s104, %s105
      %p119 = scmp.eq.s32.totalorder %s24, 1
      %p120 = por %p118, %p119
      %p122 = scmp.ne.s32.totalorder %s105, %s121
      %p123 = scmp.eq.s32.totalorder %s24, 0
      %p124 = por %p122, %p123
      %p125 = scmp.le.s32.totalorder 1, %s18
      %p126 = scmp.lt.s32.totalorder %s18, 3
      %p127 = pnand %p125, %p126
      %p128 = pneg %p127
      // Predicated region
      $region9: #{tpu_custom_call.1} parent=5 // pred_check
        _
      $region10: #{tpu_custom_call.1} parent=5 // pred_check_branch
        %130 = sbr.rel (%p127) target = $region12
      $region11: #{tpu_custom_call.1} parent=5 // pred_region
        %s131 = ssub.s32 %s18, 1
        // Predicated region
        $region13: #{tpu_custom_call.1} parent=11 // pred_check
          %p132 = pneg %p91
        $region14: #{tpu_custom_call.1} parent=11 // pred_check_branch
          %134 = sbr.rel (%p132) target = $region16
        $region15: #{tpu_custom_call.1} parent=11 // pred_region
          %s136 = ssub.s32 1920, 1920
          %137 = vsyncadd [#allocation6], %s136
          %s138 = sshll.u32 [#allocation7], 4
          %s139 = int_to_ptr.vmem [resolvable:$true] %s138
          %144 = dma.hbm_to_vmem [thread:$0]  %s2, 1920, %s139, [#allocation6], 128, 128, 8
        $region16: #{tpu_custom_call.1} parent=11 // pred_fallthru
          _
      $region12: #{tpu_custom_call.1} parent=5 // pred_fallthru
        _
      %p145 = scmp.lt.s32.totalorder %s18, 2
      // Predicated region
      $region17: #{tpu_custom_call.1} parent=5 // pred_check
        %p146 = pneg %p145
      $region18: #{tpu_custom_call.1} parent=5 // pred_check_branch
        %148 = sbr.rel (%p146) target = $region20
      $region19: #{tpu_custom_call.1} parent=5 // pred_region
        // Predicated region
        $region21: #{tpu_custom_call.1} parent=19 // pred_check
          %p149 = pneg %p38
        $region22: #{tpu_custom_call.1} parent=19 // pred_check_branch
          %151 = sbr.rel (%p149) target = $region24
        $region23: #{tpu_custom_call.1} parent=19 // pred_region
          %s152 = sand.u32 %s28, 1
          %s153 = scalar_lea.sflag [#allocation3], %s152
          %s154 = sand.u32 %s28, 1
          %s155 = smul.addr %s154, 8
          %s156 = scalar_lea.vmem [#allocation2], %s155
          %s158 = ssub.s32 128, 128
          %159 = vsyncadd %s153, %s158
          %s160 = smul.addr %s18, 128
          %s161 = scalar_lea.hbm %s0, %s160
          %s163 = sshll.u32 %s156, 4
          %s164 = int_to_ptr.vmem [resolvable:$true] %s163
          %166 = dma.hbm_to_vmem [thread:$0]  %s161, 128, %s164, %s153
        $region24: #{tpu_custom_call.1} parent=19 // pred_fallthru
          _
        // Predicated region
        $region25: #{tpu_custom_call.1} parent=19 // pred_check
          %p167 = pneg %p64
        $region26: #{tpu_custom_call.1} parent=19 // pred_check_branch
          %169 = sbr.rel (%p167) target = $region28
        $region27: #{tpu_custom_call.1} parent=19 // pred_region
          %s170 = sand.u32 %s18, 1
          %s171 = scalar_lea.sflag [#allocation6], %s170
          %s172 = sand.u32 %s54, 1
          %s173 = smul.addr %s172, 32
          %s174 = scalar_lea.vmem [#allocation5], %s173
          %s176 = ssub.s32 512, 512
          %177 = vsyncadd %s171, %s176
          %s178 = smul.addr %s18, 4
          %s179 = smul.addr %s178, 128
          %s180 = scalar_lea.hbm %s1, %s179
          %s181 = sshll.u32 %s174, 4
          %s182 = int_to_ptr.vmem [resolvable:$true] %s181
          %187 = dma.hbm_to_vmem [thread:$0]  %s180, 512, %s182, %s171, 128, 128, 8
        $region28: #{tpu_custom_call.1} parent=19 // pred_fallthru
          _
      $region20: #{tpu_custom_call.1} parent=5 // pred_fallthru
        _
      %p188 = scmp.le.s32.totalorder 1, %s18
      %p189 = scmp.lt.s32.totalorder %s18, 3
      %p190 = pnand %p188, %p189
      %p191 = pneg %p190
      // Predicated region
      $region29: #{tpu_custom_call.1} parent=5 // pred_check
        _
      $region30: #{tpu_custom_call.1} parent=5 // pred_check_branch
        %193 = sbr.rel (%p190) target = $region32
      $region31: #{tpu_custom_call.1} parent=5 // pred_region
        %s194 = ssub.s32 %s18, 1
        %s195 = sand.u32 %s31, 1
        %s196 = scalar_lea.sflag [#allocation3], %s195
        %s197 = sand.u32 %s31, 1
        %s198 = smul.addr %s197, 8
        %s199 = scalar_lea.vmem [#allocation2], %s198
        // Predicated region
        $region33: #{tpu_custom_call.1} parent=31 // pred_check
          %p200 = pneg %p44
        $region34: #{tpu_custom_call.1} parent=31 // pred_check_branch
          %202 = sbr.rel (%p200) target = $region36
        $region35: #{tpu_custom_call.1} parent=31 // pred_region
          %203 = dma.done %s196, 128
        $region36: #{tpu_custom_call.1} parent=31 // pred_fallthru
          _
        %s204 = sand.u32 %s23, 1
        %s205 = scalar_lea.sflag [#allocation6], %s204
        %s206 = sand.u32 %s57, 1
        %s207 = smul.addr %s206, 32
        %s208 = scalar_lea.vmem [#allocation5], %s207
        // Predicated region
        $region37: #{tpu_custom_call.1} parent=31 // pred_check
          %p209 = pneg %p70
        $region38: #{tpu_custom_call.1} parent=31 // pred_check_branch
          %211 = sbr.rel (%p209) target = $region40
        $region39: #{tpu_custom_call.1} parent=31 // pred_region
          %212 = dma.done %s205, 512
        $region40: #{tpu_custom_call.1} parent=31 // pred_fallthru
          _
        // Predicated region
        $region41: #{tpu_custom_call.1} parent=31 // pred_check
          %p213 = pneg %p91
        $region42: #{tpu_custom_call.1} parent=31 // pred_check_branch
          %215 = sbr.rel (%p213) target = $region44
        $region43: #{tpu_custom_call.1} parent=31 // pred_region
          %216 = dma.done [#allocation6], 1920
        $region44: #{tpu_custom_call.1} parent=31 // pred_fallthru
          _
        %s217 = sand.u32 %s31, 1
        %s218 = scalar_lea.sflag [#allocation3], %s217
        %s219 = sand.u32 %s31, 1
        %s220 = smul.addr %s219, 8
        %s221 = scalar_lea.vmem [#allocation2], %s220
        %p222 = pneg %p44
        %p223 = pneg %p41
        %s224 = sand.u32 %s23, 1
        %s225 = scalar_lea.sflag [#allocation6], %s224
        %s226 = sand.u32 %s57, 1
        %s227 = smul.addr %s226, 32
        %s228 = scalar_lea.vmem [#allocation5], %s227
        %p229 = pneg %p70
        %p230 = pneg %p67
        %p231 = pneg %p91
        %p232 = pneg %p88
        %p233 = pneg %p117
        %p234 = pneg %p114
        %s235 = sand.u32 %s104, 1
        %s236 = scalar_lea.sflag [#allocation4], %s235
        %s237 = sand.u32 %s104, 1
        %s238 = smul.addr %s237, 8
        %s239 = scalar_lea.vmem [#allocation8], %s238
        %v240 = vld [vmem:[%s199] sm:$0xff]
        %v241 = vld [vmem:[%s208] sm:$0xff]
        %v242 = vld [vmem:[%s208 + $0x8] sm:$0xff]
        %v243 = vld [vmem:[%s208 + $0x10] sm:$0xff]
        %v244 = vld [vmem:[%s208 + $0x18] sm:$0xff]
        %s245 = scalar_lea.vmem [#allocation7], 96
        %v246 = vld [vmem:[%s245] sm:$0xff]
        %v247 = vld [vmem:[%s245 + $0x8] sm:$0xff]
        %v248 = vld [vmem:[%s245 + $0x10] sm:$0x1]
        %vm249 = vcmask 64512
        %v251 = vsel %vm249, %v241, 0
        %253 = vmatprep.subr.mxu0 0.0
        %254 = vmatpush1.msra.mxu0 %v240
        %255 = vmatprep.subr.mxu0 0.0
        %256 = vmatpush1.msra.mxu0 0.0
        %257 = vmatprep.subr.mxu0 0.0
        %258 = vmatpush1.msra.mxu0 0.0
        %259 = vmatprep.subr.mxu0 0.0
        %260 = vmatpush1.msra.mxu0 0.0
        %261 = vmatprep.subr.mxu0 0.0
        %262 = vmatpush1.msra.mxu0 0.0
        %263 = vmatprep.subr.mxu0 0.0
        %264 = vmatpush1.msra.mxu0 0.0
        %265 = vmatprep.subr.mxu0 0.0
        %266 = vmatpush1.msra.mxu0 0.0
        %267 = vmatprep.subr.mxu0 0.0
        %268 = vmatpush1.msra.mxu0 0.0
        %269 = vmatprep.subr.mxu0 0.0
        %270 = vmatpush1.msra.mxu0 0.0
        %271 = vmatprep.subr.mxu0 0.0
        %272 = vmatpush1.msra.mxu0 0.0
        %273 = vmatprep.subr.mxu0 0.0
        %274 = vmatpush1.msra.mxu0 0.0
        %275 = vmatprep.subr.mxu0 0.0
        %276 = vmatpush1.msra.mxu0 0.0
        %277 = vmatprep.subr.mxu0 0.0
        %278 = vmatpush1.msra.mxu0 0.0
        %279 = vmatprep.subr.mxu0 0.0
        %280 = vmatpush1.msra.mxu0 0.0
        %281 = vmatprep.subr.mxu0 0.0
        %282 = vmatpush1.msra.mxu0 0.0
        %283 = vmatprep.subr.mxu0 0.0
        %284 = vmatpush1.msra.mxu0 0.0
        %285 = vmatprep.subr.mxu0 0.0
        %286 = vmatpush1.msra.mxu0 0.0
        %287 = vmatprep.subr.mxu0 0.0
        %288 = vmatpush1.msra.mxu0 0.0
        %289 = vmatprep.subr.mxu0 0.0
        %290 = vmatpush1.msra.mxu0 0.0
        %291 = vmatprep.subr.mxu0 0.0
        %292 = vmatpush1.msra.mxu0 0.0
        %293 = vmatprep.subr.mxu0 0.0
        %294 = vmatpush1.msra.mxu0 0.0
        %295 = vmatprep.subr.mxu0 0.0
        %296 = vmatpush1.msra.mxu0 0.0
        %297 = vmatprep.subr.mxu0 0.0
        %298 = vmatpush1.msra.mxu0 0.0
        %299 = vmatprep.subr.mxu0 0.0
        %300 = vmatpush1.msra.mxu0 0.0
        %301 = vmatprep.subr.mxu0 0.0
        %302 = vmatpush1.msra.mxu0 0.0
        %303 = vmatprep.subr.mxu0 0.0
        %304 = vmatpush1.msra.mxu0 0.0
        %305 = vmatprep.subr.mxu0 0.0
        %306 = vmatpush1.msra.mxu0 0.0
        %307 = vmatprep.subr.mxu0 0.0
        %308 = vmatpush1.msra.mxu0 0.0
        %309 = vmatprep.subr.mxu0 0.0
        %310 = vmatpush1.msra.mxu0 0.0
        %311 = vmatprep.subr.mxu0 0.0
        %312 = vmatpush1.msra.mxu0 0.0
        %313 = vmatprep.subr.mxu0 0.0
        %314 = vmatpush1.msra.mxu0 0.0
        %315 = vmatprep.subr.mxu0 0.0
        %316 = vmatpush1.msra.mxu0 0.0
        %317 = vmatprep.mubr.f32.mxu0 0.0
        %318 = vmatmul.mubr.f32.gmra.mrb[0].mxu0 %v251
        %v319 = vpop.f32.mrb[0].mxu0
        %v320 = vadd.f32 0.0, %v319
        %v321 = vpop.f32.mrb[0].mxu0
        %322 = vdwg.mxu0
        %v323 = vld [vmem:[#allocation7] sm:$0xff]
        %v324 = vld [vmem:[#allocation7 + $0x8] sm:$0xff]
        %v325 = vld [vmem:[#allocation7 + $0x10] sm:$0x1]
        %vm326 = vcmask 138240
        %v328 = vsel %vm326, %v320, 0
        %vm330 = vcmask 1040384
        %v332 = vsel %vm330, %v325, 0
        %334 = vmatprep.subr.mxu0 0.0
        %335 = vmatpush1.msra.mxu0 %v323
        %336 = vmatprep.subr.mxu0 0.0
        %337 = vmatpush1.msra.mxu0 %v324
        %338 = vmatprep.subr.mxu0 0.0
        %339 = vmatpush1.msra.mxu0 %v332
        %340 = vmatprep.subr.mxu0 0.0
        %341 = vmatpush1.msra.mxu0 0.0
        %342 = vmatprep.subr.mxu0 0.0
        %343 = vmatpush1.msra.mxu0 0.0
        %344 = vmatprep.subr.mxu0 0.0
        %345 = vmatpush1.msra.mxu0 0.0
        %346 = vmatprep.subr.mxu0 0.0
        %347 = vmatpush1.msra.mxu0 0.0
        %348 = vmatprep.subr.mxu0 0.0
        %349 = vmatpush1.msra.mxu0 0.0
        %350 = vmatprep.subr.mxu0 0.0
        %351 = vmatpush1.msra.mxu0 0.0
        %352 = vmatprep.subr.mxu0 0.0
        %353 = vmatpush1.msra.mxu0 0.0
        %354 = vmatprep.subr.mxu0 0.0
        %355 = vmatpush1.msra.mxu0 0.0
        %356 = vmatprep.subr.mxu0 0.0
        %357 = vmatpush1.msra.mxu0 0.0
        %358 = vmatprep.subr.mxu0 0.0
        %359 = vmatpush1.msra.mxu0 0.0
        %360 = vmatprep.subr.mxu0 0.0
        %361 = vmatpush1.msra.mxu0 0.0
        %362 = vmatprep.subr.mxu0 0.0
        %363 = vmatpush1.msra.mxu0 0.0
        %364 = vmatprep.subr.mxu0 0.0
        %365 = vmatpush1.msra.mxu0 0.0
        %366 = vmatprep.subr.mxu0 0.0
        %367 = vmatpush1.msra.mxu0 0.0
        %368 = vmatprep.subr.mxu0 0.0
        %369 = vmatpush1.msra.mxu0 0.0
        %370 = vmatprep.subr.mxu0 0.0
        %371 = vmatpush1.msra.mxu0 0.0
        %372 = vmatprep.subr.mxu0 0.0
        %373 = vmatpush1.msra.mxu0 0.0
        %374 = vmatprep.subr.mxu0 0.0
        %375 = vmatpush1.msra.mxu0 0.0
        %376 = vmatprep.subr.mxu0 0.0
        %377 = vmatpush1.msra.mxu0 0.0
        %378 = vmatprep.subr.mxu0 0.0
        %379 = vmatpush1.msra.mxu0 0.0
        %380 = vmatprep.subr.mxu0 0.0
        %381 = vmatpush1.msra.mxu0 0.0
        %382 = vmatprep.subr.mxu0 0.0
        %383 = vmatpush1.msra.mxu0 0.0
        %384 = vmatprep.subr.mxu0 0.0
        %385 = vmatpush1.msra.mxu0 0.0
        %386 = vmatprep.subr.mxu0 0.0
        %387 = vmatpush1.msra.mxu0 0.0
        %388 = vmatprep.subr.mxu0 0.0
        %389 = vmatpush1.msra.mxu0 0.0
        %390 = vmatprep.subr.mxu0 0.0
        %391 = vmatpush1.msra.mxu0 0.0
        %392 = vmatprep.subr.mxu0 0.0
        %393 = vmatpush1.msra.mxu0 0.0
        %394 = vmatprep.subr.mxu0 0.0
        %395 = vmatpush1.msra.mxu0 0.0
        %396 = vmatprep.subr.mxu0 0.0
        %397 = vmatpush1.msra.mxu0 0.0
        %398 = vmatprep.mubr.f32.mxu0 0.0
        %399 = vmatmul.mubr.f32.gmra.mrb[0].mxu0 %v328
        %v400 = vpop.f32.mrb[0].mxu0
        %v401 = vadd.f32 0.0, %v400
        %v402 = vpop.f32.mrb[0].mxu0
        %403 = vdwg.mxu0
        %v405 = vsel %vm326, %v240, 0
        %v408 = vsel %vm330, %v248, 0
        %410 = vmatprep.subr.mxu0 0.0
        %411 = vmatpush1.msra.mxu0 %v246
        %412 = vmatprep.subr.mxu0 0.0
        %413 = vmatpush1.msra.mxu0 %v247
        %414 = vmatprep.subr.mxu0 0.0
        %415 = vmatpush1.msra.mxu0 %v408
        %416 = vmatprep.subr.mxu0 0.0
        %417 = vmatpush1.msra.mxu0 0.0
        %418 = vmatprep.subr.mxu0 0.0
        %419 = vmatpush1.msra.mxu0 0.0
        %420 = vmatprep.subr.mxu0 0.0
        %421 = vmatpush1.msra.mxu0 0.0
        %422 = vmatprep.subr.mxu0 0.0
        %423 = vmatpush1.msra.mxu0 0.0
        %424 = vmatprep.subr.mxu0 0.0
        %425 = vmatpush1.msra.mxu0 0.0
        %426 = vmatprep.subr.mxu0 0.0
        %427 = vmatpush1.msra.mxu0 0.0
        %428 = vmatprep.subr.mxu0 0.0
        %429 = vmatpush1.msra.mxu0 0.0
        %430 = vmatprep.subr.mxu0 0.0
        %431 = vmatpush1.msra.mxu0 0.0
        %432 = vmatprep.subr.mxu0 0.0
        %433 = vmatpush1.msra.mxu0 0.0
        %434 = vmatprep.subr.mxu0 0.0
        %435 = vmatpush1.msra.mxu0 0.0
        %436 = vmatprep.subr.mxu0 0.0
        %437 = vmatpush1.msra.mxu0 0.0
        %438 = vmatprep.subr.mxu0 0.0
        %439 = vmatpush1.msra.mxu0 0.0
        %440 = vmatprep.subr.mxu0 0.0
        %441 = vmatpush1.msra.mxu0 0.0
        %442 = vmatprep.subr.mxu0 0.0
        %443 = vmatpush1.msra.mxu0 0.0
        %444 = vmatprep.subr.mxu0 0.0
        %445 = vmatpush1.msra.mxu0 0.0
        %446 = vmatprep.subr.mxu0 0.0
        %447 = vmatpush1.msra.mxu0 0.0
        %448 = vmatprep.subr.mxu0 0.0
        %449 = vmatpush1.msra.mxu0 0.0
        %450 = vmatprep.subr.mxu0 0.0
        %451 = vmatpush1.msra.mxu0 0.0
        %452 = vmatprep.subr.mxu0 0.0
        %453 = vmatpush1.msra.mxu0 0.0
        %454 = vmatprep.subr.mxu0 0.0
        %455 = vmatpush1.msra.mxu0 0.0
        %456 = vmatprep.subr.mxu0 0.0
        %457 = vmatpush1.msra.mxu0 0.0
        %458 = vmatprep.subr.mxu0 0.0
        %459 = vmatpush1.msra.mxu0 0.0
        %460 = vmatprep.subr.mxu0 0.0
        %461 = vmatpush1.msra.mxu0 0.0
        %462 = vmatprep.subr.mxu0 0.0
        %463 = vmatpush1.msra.mxu0 0.0
        %464 = vmatprep.subr.mxu0 0.0
        %465 = vmatpush1.msra.mxu0 0.0
        %466 = vmatprep.subr.mxu0 0.0
        %467 = vmatpush1.msra.mxu0 0.0
        %468 = vmatprep.subr.mxu0 0.0
        %469 = vmatpush1.msra.mxu0 0.0
        %470 = vmatprep.subr.mxu0 0.0
        %471 = vmatpush1.msra.mxu0 0.0
        %472 = vmatprep.subr.mxu0 0.0
        %473 = vmatpush1.msra.mxu0 0.0
        %474 = vmatprep.mubr.f32.mxu0 0.0
        %475 = vmatmul.mubr.f32.gmra.mrb[0].mxu0 %v405
        %v476 = vpop.f32.mrb[0].mxu0
        %v477 = vadd.f32 %v401, %v476
        %v478 = vpop.f32.mrb[0].mxu0
        %479 = vdwg.mxu0
        %v481 = vsel %vm249, %v242, 0
        %483 = vmatprep.subr.mxu0 0.0
        %484 = vmatpush1.msra.mxu0 %v240
        %485 = vmatprep.subr.mxu0 0.0
        %486 = vmatpush1.msra.mxu0 0.0
        %487 = vmatprep.subr.mxu0 0.0
        %488 = vmatpush1.msra.mxu0 0.0
        %489 = vmatprep.subr.mxu0 0.0
        %490 = vmatpush1.msra.mxu0 0.0
        %491 = vmatprep.subr.mxu0 0.0
        %492 = vmatpush1.msra.mxu0 0.0
        %493 = vmatprep.subr.mxu0 0.0
        %494 = vmatpush1.msra.mxu0 0.0
        %495 = vmatprep.subr.mxu0 0.0
        %496 = vmatpush1.msra.mxu0 0.0
        %497 = vmatprep.subr.mxu0 0.0
        %498 = vmatpush1.msra.mxu0 0.0
        %499 = vmatprep.subr.mxu0 0.0
        %500 = vmatpush1.msra.mxu0 0.0
        %501 = vmatprep.subr.mxu0 0.0
        %502 = vmatpush1.msra.mxu0 0.0
        %503 = vmatprep.subr.mxu0 0.0
        %504 = vmatpush1.msra.mxu0 0.0
        %505 = vmatprep.subr.mxu0 0.0
        %506 = vmatpush1.msra.mxu0 0.0
        %507 = vmatprep.subr.mxu0 0.0
        %508 = vmatpush1.msra.mxu0 0.0
        %509 = vmatprep.subr.mxu0 0.0
        %510 = vmatpush1.msra.mxu0 0.0
        %511 = vmatprep.subr.mxu0 0.0
        %512 = vmatpush1.msra.mxu0 0.0
        %513 = vmatprep.subr.mxu0 0.0
        %514 = vmatpush1.msra.mxu0 0.0
        %515 = vmatprep.subr.mxu0 0.0
        %516 = vmatpush1.msra.mxu0 0.0
        %517 = vmatprep.subr.mxu0 0.0
        %518 = vmatpush1.msra.mxu0 0.0
        %519 = vmatprep.subr.mxu0 0.0
        %520 = vmatpush1.msra.mxu0 0.0
        %521 = vmatprep.subr.mxu0 0.0
        %522 = vmatpush1.msra.mxu0 0.0
        %523 = vmatprep.subr.mxu0 0.0
        %524 = vmatpush1.msra.mxu0 0.0
        %525 = vmatprep.subr.mxu0 0.0
        %526 = vmatpush1.msra.mxu0 0.0
        %527 = vmatprep.subr.mxu0 0.0
        %528 = vmatpush1.msra.mxu0 0.0
        %529 = vmatprep.subr.mxu0 0.0
        %530 = vmatpush1.msra.mxu0 0.0
        %531 = vmatprep.subr.mxu0 0.0
        %532 = vmatpush1.msra.mxu0 0.0
        %533 = vmatprep.subr.mxu0 0.0
        %534 = vmatpush1.msra.mxu0 0.0
        %535 = vmatprep.subr.mxu0 0.0
        %536 = vmatpush1.msra.mxu0 0.0
        %537 = vmatprep.subr.mxu0 0.0
        %538 = vmatpush1.msra.mxu0 0.0
        %539 = vmatprep.subr.mxu0 0.0
        %540 = vmatpush1.msra.mxu0 0.0
        %541 = vmatprep.subr.mxu0 0.0
        %542 = vmatpush1.msra.mxu0 0.0
        %543 = vmatprep.subr.mxu0 0.0
        %544 = vmatpush1.msra.mxu0 0.0
        %545 = vmatprep.subr.mxu0 0.0
        %546 = vmatpush1.msra.mxu0 0.0
        %547 = vmatprep.mubr.f32.mxu0 0.0
        %548 = vmatmul.mubr.f32.gmra.mrb[0].mxu0 %v481
        %v549 = vpop.f32.mrb[0].mxu0
        %v550 = vadd.f32 0.0, %v549
        %v551 = vpop.f32.mrb[0].mxu0
        %552 = vdwg.mxu0
        %s553 = scalar_lea.vmem [#allocation7], 24
        %v554 = vld [vmem:[%s553] sm:$0xff]
        %v555 = vld [vmem:[%s553 + $0x8] sm:$0xff]
        %v556 = vld [vmem:[%s553 + $0x10] sm:$0x1]
        %v558 = vsel %vm326, %v550, 0
        %v561 = vsel %vm330, %v556, 0
        %563 = vmatprep.subr.mxu0 0.0
        %564 = vmatpush1.msra.mxu0 %v554
        %565 = vmatprep.subr.mxu0 0.0
        %566 = vmatpush1.msra.mxu0 %v555
        %567 = vmatprep.subr.mxu0 0.0
        %568 = vmatpush1.msra.mxu0 %v561
        %569 = vmatprep.subr.mxu0 0.0
        %570 = vmatpush1.msra.mxu0 0.0
        %571 = vmatprep.subr.mxu0 0.0
        %572 = vmatpush1.msra.mxu0 0.0
        %573 = vmatprep.subr.mxu0 0.0
        %574 = vmatpush1.msra.mxu0 0.0
        %575 = vmatprep.subr.mxu0 0.0
        %576 = vmatpush1.msra.mxu0 0.0
        %577 = vmatprep.subr.mxu0 0.0
        %578 = vmatpush1.msra.mxu0 0.0
        %579 = vmatprep.subr.mxu0 0.0
        %580 = vmatpush1.msra.mxu0 0.0
        %581 = vmatprep.subr.mxu0 0.0
        %582 = vmatpush1.msra.mxu0 0.0
        %583 = vmatprep.subr.mxu0 0.0
        %584 = vmatpush1.msra.mxu0 0.0
        %585 = vmatprep.subr.mxu0 0.0
        %586 = vmatpush1.msra.mxu0 0.0
        %587 = vmatprep.subr.mxu0 0.0
        %588 = vmatpush1.msra.mxu0 0.0
        %589 = vmatprep.subr.mxu0 0.0
        %590 = vmatpush1.msra.mxu0 0.0
        %591 = vmatprep.subr.mxu0 0.0
        %592 = vmatpush1.msra.mxu0 0.0
        %593 = vmatprep.subr.mxu0 0.0
        %594 = vmatpush1.msra.mxu0 0.0
        %595 = vmatprep.subr.mxu0 0.0
        %596 = vmatpush1.msra.mxu0 0.0
        %597 = vmatprep.subr.mxu0 0.0
        %598 = vmatpush1.msra.mxu0 0.0
        %599 = vmatprep.subr.mxu0 0.0
        %600 = vmatpush1.msra.mxu0 0.0
        %601 = vmatprep.subr.mxu0 0.0
        %602 = vmatpush1.msra.mxu0 0.0
        %603 = vmatprep.subr.mxu0 0.0
        %604 = vmatpush1.msra.mxu0 0.0
        %605 = vmatprep.subr.mxu0 0.0
        %606 = vmatpush1.msra.mxu0 0.0
        %607 = vmatprep.subr.mxu0 0.0
        %608 = vmatpush1.msra.mxu0 0.0
        %609 = vmatprep.subr.mxu0 0.0
        %610 = vmatpush1.msra.mxu0 0.0
        %611 = vmatprep.subr.mxu0 0.0
        %612 = vmatpush1.msra.mxu0 0.0
        %613 = vmatprep.subr.mxu0 0.0
        %614 = vmatpush1.msra.mxu0 0.0
        %615 = vmatprep.subr.mxu0 0.0
        %616 = vmatpush1.msra.mxu0 0.0
        %617 = vmatprep.subr.mxu0 0.0
        %618 = vmatpush1.msra.mxu0 0.0
        %619 = vmatprep.subr.mxu0 0.0
        %620 = vmatpush1.msra.mxu0 0.0
        %621 = vmatprep.subr.mxu0 0.0
        %622 = vmatpush1.msra.mxu0 0.0
        %623 = vmatprep.subr.mxu0 0.0
        %624 = vmatpush1.msra.mxu0 0.0
        %625 = vmatprep.subr.mxu0 0.0
        %626 = vmatpush1.msra.mxu0 0.0
        %627 = vmatprep.mubr.f32.mxu0 0.0
        %628 = vmatmul.mubr.f32.gmra.mrb[0].mxu0 %v558
        %v629 = vpop.f32.mrb[0].mxu0
        %v630 = vadd.f32 0.0, %v629
        %v631 = vpop.f32.mrb[0].mxu0
        %632 = vdwg.mxu0
        %v633 = vadd.f32 %v477, %v630
        %v635 = vsel %vm249, %v243, 0
        %637 = vmatprep.subr.mxu0 0.0
        %638 = vmatpush1.msra.mxu0 %v240
        %639 = vmatprep.subr.mxu0 0.0
        %640 = vmatpush1.msra.mxu0 0.0
        %641 = vmatprep.subr.mxu0 0.0
        %642 = vmatpush1.msra.mxu0 0.0
        %643 = vmatprep.subr.mxu0 0.0
        %644 = vmatpush1.msra.mxu0 0.0
        %645 = vmatprep.subr.mxu0 0.0
        %646 = vmatpush1.msra.mxu0 0.0
        %647 = vmatprep.subr.mxu0 0.0
        %648 = vmatpush1.msra.mxu0 0.0
        %649 = vmatprep.subr.mxu0 0.0
        %650 = vmatpush1.msra.mxu0 0.0
        %651 = vmatprep.subr.mxu0 0.0
        %652 = vmatpush1.msra.mxu0 0.0
        %653 = vmatprep.subr.mxu0 0.0
        %654 = vmatpush1.msra.mxu0 0.0
        %655 = vmatprep.subr.mxu0 0.0
        %656 = vmatpush1.msra.mxu0 0.0
        %657 = vmatprep.subr.mxu0 0.0
        %658 = vmatpush1.msra.mxu0 0.0
        %659 = vmatprep.subr.mxu0 0.0
        %660 = vmatpush1.msra.mxu0 0.0
        %661 = vmatprep.subr.mxu0 0.0
        %662 = vmatpush1.msra.mxu0 0.0
        %663 = vmatprep.subr.mxu0 0.0
        %664 = vmatpush1.msra.mxu0 0.0
        %665 = vmatprep.subr.mxu0 0.0
        %666 = vmatpush1.msra.mxu0 0.0
        %667 = vmatprep.subr.mxu0 0.0
        %668 = vmatpush1.msra.mxu0 0.0
        %669 = vmatprep.subr.mxu0 0.0
        %670 = vmatpush1.msra.mxu0 0.0
        %671 = vmatprep.subr.mxu0 0.0
        %672 = vmatpush1.msra.mxu0 0.0
        %673 = vmatprep.subr.mxu0 0.0
        %674 = vmatpush1.msra.mxu0 0.0
        %675 = vmatprep.subr.mxu0 0.0
        %676 = vmatpush1.msra.mxu0 0.0
        %677 = vmatprep.subr.mxu0 0.0
        %678 = vmatpush1.msra.mxu0 0.0
        %679 = vmatprep.subr.mxu0 0.0
        %680 = vmatpush1.msra.mxu0 0.0
        %681 = vmatprep.subr.mxu0 0.0
        %682 = vmatpush1.msra.mxu0 0.0
        %683 = vmatprep.subr.mxu0 0.0
        %684 = vmatpush1.msra.mxu0 0.0
        %685 = vmatprep.subr.mxu0 0.0
        %686 = vmatpush1.msra.mxu0 0.0
        %687 = vmatprep.subr.mxu0 0.0
        %688 = vmatpush1.msra.mxu0 0.0
        %689 = vmatprep.subr.mxu0 0.0
        %690 = vmatpush1.msra.mxu0 0.0
        %691 = vmatprep.subr.mxu0 0.0
        %692 = vmatpush1.msra.mxu0 0.0
        %693 = vmatprep.subr.mxu0 0.0
        %694 = vmatpush1.msra.mxu0 0.0
        %695 = vmatprep.subr.mxu0 0.0
        %696 = vmatpush1.msra.mxu0 0.0
        %697 = vmatprep.subr.mxu0 0.0
        %698 = vmatpush1.msra.mxu0 0.0
        %699 = vmatprep.subr.mxu0 0.0
        %700 = vmatpush1.msra.mxu0 0.0
        %701 = vmatprep.mubr.f32.mxu0 0.0
        %702 = vmatmul.mubr.f32.gmra.mrb[0].mxu0 %v635
        %v703 = vpop.f32.mrb[0].mxu0
        %v704 = vadd.f32 0.0, %v703
        %v705 = vpop.f32.mrb[0].mxu0
        %706 = vdwg.mxu0
        %s707 = scalar_lea.vmem [#allocation7], 48
        %v708 = vld [vmem:[%s707] sm:$0xff]
        %v709 = vld [vmem:[%s707 + $0x8] sm:$0xff]
        %v710 = vld [vmem:[%s707 + $0x10] sm:$0x1]
        %v712 = vsel %vm326, %v704, 0
        %v715 = vsel %vm330, %v710, 0
        %717 = vmatprep.subr.mxu0 0.0
        %718 = vmatpush1.msra.mxu0 %v708
        %719 = vmatprep.subr.mxu0 0.0
        %720 = vmatpush1.msra.mxu0 %v709
        %721 = vmatprep.subr.mxu0 0.0
        %722 = vmatpush1.msra.mxu0 %v715
        %723 = vmatprep.subr.mxu0 0.0
        %724 = vmatpush1.msra.mxu0 0.0
        %725 = vmatprep.subr.mxu0 0.0
        %726 = vmatpush1.msra.mxu0 0.0
        %727 = vmatprep.subr.mxu0 0.0
        %728 = vmatpush1.msra.mxu0 0.0
        %729 = vmatprep.subr.mxu0 0.0
        %730 = vmatpush1.msra.mxu0 0.0
        %731 = vmatprep.subr.mxu0 0.0
        %732 = vmatpush1.msra.mxu0 0.0
        %733 = vmatprep.subr.mxu0 0.0
        %734 = vmatpush1.msra.mxu0 0.0
        %735 = vmatprep.subr.mxu0 0.0
        %736 = vmatpush1.msra.mxu0 0.0
        %737 = vmatprep.subr.mxu0 0.0
        %738 = vmatpush1.msra.mxu0 0.0
        %739 = vmatprep.subr.mxu0 0.0
        %740 = vmatpush1.msra.mxu0 0.0
        %741 = vmatprep.subr.mxu0 0.0
        %742 = vmatpush1.msra.mxu0 0.0
        %743 = vmatprep.subr.mxu0 0.0
        %744 = vmatpush1.msra.mxu0 0.0
        %745 = vmatprep.subr.mxu0 0.0
        %746 = vmatpush1.msra.mxu0 0.0
        %747 = vmatprep.subr.mxu0 0.0
        %748 = vmatpush1.msra.mxu0 0.0
        %749 = vmatprep.subr.mxu0 0.0
        %750 = vmatpush1.msra.mxu0 0.0
        %751 = vmatprep.subr.mxu0 0.0
        %752 = vmatpush1.msra.mxu0 0.0
        %753 = vmatprep.subr.mxu0 0.0
        %754 = vmatpush1.msra.mxu0 0.0
        %755 = vmatprep.subr.mxu0 0.0
        %756 = vmatpush1.msra.mxu0 0.0
        %757 = vmatprep.subr.mxu0 0.0
        %758 = vmatpush1.msra.mxu0 0.0
        %759 = vmatprep.subr.mxu0 0.0
        %760 = vmatpush1.msra.mxu0 0.0
        %761 = vmatprep.subr.mxu0 0.0
        %762 = vmatpush1.msra.mxu0 0.0
        %763 = vmatprep.subr.mxu0 0.0
        %764 = vmatpush1.msra.mxu0 0.0
        %765 = vmatprep.subr.mxu0 0.0
        %766 = vmatpush1.msra.mxu0 0.0
        %767 = vmatprep.subr.mxu0 0.0
        %768 = vmatpush1.msra.mxu0 0.0
        %769 = vmatprep.subr.mxu0 0.0
        %770 = vmatpush1.msra.mxu0 0.0
        %771 = vmatprep.subr.mxu0 0.0
        %772 = vmatpush1.msra.mxu0 0.0
        %773 = vmatprep.subr.mxu0 0.0
        %774 = vmatpush1.msra.mxu0 0.0
        %775 = vmatprep.subr.mxu0 0.0
        %776 = vmatpush1.msra.mxu0 0.0
        %777 = vmatprep.subr.mxu0 0.0
        %778 = vmatpush1.msra.mxu0 0.0
        %779 = vmatprep.subr.mxu0 0.0
        %780 = vmatpush1.msra.mxu0 0.0
        %781 = vmatprep.mubr.f32.mxu0 0.0
        %782 = vmatmul.mubr.f32.gmra.mrb[0].mxu0 %v712
        %v783 = vpop.f32.mrb[0].mxu0
        %v784 = vadd.f32 0.0, %v783
        %v785 = vpop.f32.mrb[0].mxu0
        %786 = vdwg.mxu0
        %v787 = vadd.f32 %v633, %v784
        %v789 = vsel %vm249, %v244, 0
        %791 = vmatprep.subr.mxu0 0.0
        %792 = vmatpush1.msra.mxu0 %v240
        %793 = vmatprep.subr.mxu0 0.0
        %794 = vmatpush1.msra.mxu0 0.0
        %795 = vmatprep.subr.mxu0 0.0
        %796 = vmatpush1.msra.mxu0 0.0
        %797 = vmatprep.subr.mxu0 0.0
        %798 = vmatpush1.msra.mxu0 0.0
        %799 = vmatprep.subr.mxu0 0.0
        %800 = vmatpush1.msra.mxu0 0.0
        %801 = vmatprep.subr.mxu0 0.0
        %802 = vmatpush1.msra.mxu0 0.0
        %803 = vmatprep.subr.mxu0 0.0
        %804 = vmatpush1.msra.mxu0 0.0
        %805 = vmatprep.subr.mxu0 0.0
        %806 = vmatpush1.msra.mxu0 0.0
        %807 = vmatprep.subr.mxu0 0.0
        %808 = vmatpush1.msra.mxu0 0.0
        %809 = vmatprep.subr.mxu0 0.0
        %810 = vmatpush1.msra.mxu0 0.0
        %811 = vmatprep.subr.mxu0 0.0
        %812 = vmatpush1.msra.mxu0 0.0
        %813 = vmatprep.subr.mxu0 0.0
        %814 = vmatpush1.msra.mxu0 0.0
        %815 = vmatprep.subr.mxu0 0.0
        %816 = vmatpush1.msra.mxu0 0.0
        %817 = vmatprep.subr.mxu0 0.0
        %818 = vmatpush1.msra.mxu0 0.0
        %819 = vmatprep.subr.mxu0 0.0
        %820 = vmatpush1.msra.mxu0 0.0
        %821 = vmatprep.subr.mxu0 0.0
        %822 = vmatpush1.msra.mxu0 0.0
        %823 = vmatprep.subr.mxu0 0.0
        %824 = vmatpush1.msra.mxu0 0.0
        %825 = vmatprep.subr.mxu0 0.0
        %826 = vmatpush1.msra.mxu0 0.0
        %827 = vmatprep.subr.mxu0 0.0
        %828 = vmatpush1.msra.mxu0 0.0
        %829 = vmatprep.subr.mxu0 0.0
        %830 = vmatpush1.msra.mxu0 0.0
        %831 = vmatprep.subr.mxu0 0.0
        %832 = vmatpush1.msra.mxu0 0.0
        %833 = vmatprep.subr.mxu0 0.0
        %834 = vmatpush1.msra.mxu0 0.0
        %835 = vmatprep.subr.mxu0 0.0
        %836 = vmatpush1.msra.mxu0 0.0
        %837 = vmatprep.subr.mxu0 0.0
        %838 = vmatpush1.msra.mxu0 0.0
        %839 = vmatprep.subr.mxu0 0.0
        %840 = vmatpush1.msra.mxu0 0.0
        %841 = vmatprep.subr.mxu0 0.0
        %842 = vmatpush1.msra.mxu0 0.0
        %843 = vmatprep.subr.mxu0 0.0
        %844 = vmatpush1.msra.mxu0 0.0
        %845 = vmatprep.subr.mxu0 0.0
        %846 = vmatpush1.msra.mxu0 0.0
        %847 = vmatprep.subr.mxu0 0.0
        %848 = vmatpush1.msra.mxu0 0.0
        %849 = vmatprep.subr.mxu0 0.0
        %850 = vmatpush1.msra.mxu0 0.0
        %851 = vmatprep.subr.mxu0 0.0
        %852 = vmatpush1.msra.mxu0 0.0
        %853 = vmatprep.subr.mxu0 0.0
        %854 = vmatpush1.msra.mxu0 0.0
        %855 = vmatprep.mubr.f32.mxu0 0.0
        %856 = vmatmul.mubr.f32.gmra.mrb[0].mxu0 %v789
        %v857 = vpop.f32.mrb[0].mxu0
        %v858 = vadd.f32 0.0, %v857
        %v859 = vpop.f32.mrb[0].mxu0
        %860 = vdwg.mxu0
        %s861 = scalar_lea.vmem [#allocation7], 72
        %v862 = vld [vmem:[%s861] sm:$0xff]
        %v863 = vld [vmem:[%s861 + $0x8] sm:$0xff]
        %v864 = vld [vmem:[%s861 + $0x10] sm:$0x1]
        %v866 = vsel %vm326, %v858, 0
        %v869 = vsel %vm330, %v864, 0
        %871 = vmatprep.subr.mxu0 0.0
        %872 = vmatpush1.msra.mxu0 %v862
        %873 = vmatprep.subr.mxu0 0.0
        %874 = vmatpush1.msra.mxu0 %v863
        %875 = vmatprep.subr.mxu0 0.0
        %876 = vmatpush1.msra.mxu0 %v869
        %877 = vmatprep.subr.mxu0 0.0
        %878 = vmatpush1.msra.mxu0 0.0
        %879 = vmatprep.subr.mxu0 0.0
        %880 = vmatpush1.msra.mxu0 0.0
        %881 = vmatprep.subr.mxu0 0.0
        %882 = vmatpush1.msra.mxu0 0.0
        %883 = vmatprep.subr.mxu0 0.0
        %884 = vmatpush1.msra.mxu0 0.0
        %885 = vmatprep.subr.mxu0 0.0
        %886 = vmatpush1.msra.mxu0 0.0
        %887 = vmatprep.subr.mxu0 0.0
        %888 = vmatpush1.msra.mxu0 0.0
        %889 = vmatprep.subr.mxu0 0.0
        %890 = vmatpush1.msra.mxu0 0.0
        %891 = vmatprep.subr.mxu0 0.0
        %892 = vmatpush1.msra.mxu0 0.0
        %893 = vmatprep.subr.mxu0 0.0
        %894 = vmatpush1.msra.mxu0 0.0
        %895 = vmatprep.subr.mxu0 0.0
        %896 = vmatpush1.msra.mxu0 0.0
        %897 = vmatprep.subr.mxu0 0.0
        %898 = vmatpush1.msra.mxu0 0.0
        %899 = vmatprep.subr.mxu0 0.0
        %900 = vmatpush1.msra.mxu0 0.0
        %901 = vmatprep.subr.mxu0 0.0
        %902 = vmatpush1.msra.mxu0 0.0
        %903 = vmatprep.subr.mxu0 0.0
        %904 = vmatpush1.msra.mxu0 0.0
        %905 = vmatprep.subr.mxu0 0.0
        %906 = vmatpush1.msra.mxu0 0.0
        %907 = vmatprep.subr.mxu0 0.0
        %908 = vmatpush1.msra.mxu0 0.0
        %909 = vmatprep.subr.mxu0 0.0
        %910 = vmatpush1.msra.mxu0 0.0
        %911 = vmatprep.subr.mxu0 0.0
        %912 = vmatpush1.msra.mxu0 0.0
        %913 = vmatprep.subr.mxu0 0.0
        %914 = vmatpush1.msra.mxu0 0.0
        %915 = vmatprep.subr.mxu0 0.0
        %916 = vmatpush1.msra.mxu0 0.0
        %917 = vmatprep.subr.mxu0 0.0
        %918 = vmatpush1.msra.mxu0 0.0
        %919 = vmatprep.subr.mxu0 0.0
        %920 = vmatpush1.msra.mxu0 0.0
        %921 = vmatprep.subr.mxu0 0.0
        %922 = vmatpush1.msra.mxu0 0.0
        %923 = vmatprep.subr.mxu0 0.0
        %924 = vmatpush1.msra.mxu0 0.0
        %925 = vmatprep.subr.mxu0 0.0
        %926 = vmatpush1.msra.mxu0 0.0
        %927 = vmatprep.subr.mxu0 0.0
        %928 = vmatpush1.msra.mxu0 0.0
        %929 = vmatprep.subr.mxu0 0.0
        %930 = vmatpush1.msra.mxu0 0.0
        %931 = vmatprep.subr.mxu0 0.0
        %932 = vmatpush1.msra.mxu0 0.0
        %933 = vmatprep.subr.mxu0 0.0
        %934 = vmatpush1.msra.mxu0 0.0
        %935 = vmatprep.mubr.f32.mxu0 0.0
        %936 = vmatmul.mubr.f32.gmra.mrb[0].mxu0 %v866
        %v937 = vpop.f32.mrb[0].mxu0
        %v938 = vadd.f32 0.0, %v937
        %v939 = vpop.f32.mrb[0].mxu0
        %940 = vdwg.mxu0
        %v941 = vadd.f32 %v787, %v938
        %v942 = vtanh.pop %v941
        %943 = vst [vmem:[%s239] sm:$0xff] %v942
        %s944 = sand.u32 %s104, 1
        %s945 = scalar_lea.sflag [#allocation4], %s944
        %s946 = sand.u32 %s104, 1
        %s947 = smul.addr %s946, 8
        %s948 = scalar_lea.vmem [#allocation8], %s947
        // Predicated region
        $region45: #{tpu_custom_call.1} parent=31 // pred_check
          %p949 = pneg %p114
        $region46: #{tpu_custom_call.1} parent=31 // pred_check_branch
          %951 = sbr.rel (%p949) target = $region48
        $region47: #{tpu_custom_call.1} parent=31 // pred_region
          %s953 = ssub.s32 128, 128
          %954 = vsyncadd %s945, %s953
          %s955 = smul.addr %s23, 128
          %s956 = scalar_lea.hbm %s3, %s955
          %s958 = sshll.u32 %s948, 4
          %s959 = int_to_ptr.vmem [resolvable:$true] %s958
          %961 = dma.vmem_to_hbm [thread:$0]  %s959, 128, %s956, %s945
        $region48: #{tpu_custom_call.1} parent=31 // pred_fallthru
          _
      $region32: #{tpu_custom_call.1} parent=5 // pred_fallthru
        _
      %p962 = scmp.le.s32.totalorder 2, %s18
      // Predicated region
      $region49: #{tpu_custom_call.1} parent=5 // pred_check
        %p963 = pneg %p962
      $region50: #{tpu_custom_call.1} parent=5 // pred_check_branch
        %965 = sbr.rel (%p963) target = $region52
      $region51: #{tpu_custom_call.1} parent=5 // pred_region
        %s966 = ssub.s32 %s18, 2
        // Predicated region
        $region53: #{tpu_custom_call.1} parent=51 // pred_check
          %p967 = pneg %p120
        $region54: #{tpu_custom_call.1} parent=51 // pred_check_branch
          %969 = sbr.rel (%p967) target = $region56
        $region55: #{tpu_custom_call.1} parent=51 // pred_region
          %s970 = sand.u32 %s105, 1
          %s971 = scalar_lea.sflag [#allocation4], %s970
          %s972 = sand.u32 %s105, 1
          %s973 = smul.addr %s972, 8
          %s974 = scalar_lea.vmem [#allocation8], %s973
          %975 = dma.done %s971, 128
        $region56: #{tpu_custom_call.1} parent=51 // pred_fallthru
          _
      $region52: #{tpu_custom_call.1} parent=5 // pred_fallthru
        _
    $region6: #{tpu_custom_call.1} parent=1 // loop_footer
      %s22 = sadd.s32 1, %s18
    $region7: #{tpu_custom_call.1} parent=1 // loop_footer_branch
      %17 = sbr.rel target = $region3
    $region8: #{tpu_custom_call.1} parent=1 // loop_exit
      _
    %976 = vsyncpa [#allocation3], 1
    %s977 = scalar_lea.sflag [#allocation3], 1
    %978 = vsyncpa %s977, 1
    %979 = vsyncpa [#allocation6], 1
    %s980 = scalar_lea.sflag [#allocation6], 1
    %981 = vsyncpa %s980, 1
    %982 = vsyncpa [#allocation4], 1
    %s983 = scalar_lea.sflag [#allocation4], 1
    %984 = vsyncpa %s983, 1

</llo_original>
